<compile_context>
chip_gen: v7x
topology: tpu7x:2x2x1
jax: 0.10.0
libtpu: 0.0.40
codegen_flags: <defaults>
</compile_context>

<pallas_src>
import functools
import math

import jax
import jax.numpy as jnp
from jax.experimental import pallas as pl
from jax.experimental.pallas import tpu as pltpu


# ----------------------------------------------------------------------------
# Pallas kernel: out[s, b*D:(b+1)*D] = x[s, b*D:(b+1)*D] + pe[s, :]
# x_ref/o_ref: [seq_tile, B*D]   pe_ref: [seq_tile, D]
# The batch broadcast is a static unrolled loop of ref-slice add/stores: when
# D % 128 == 0 every load/store is a full, unmasked, lane-dense vreg access.
# ----------------------------------------------------------------------------
def _structural_pe_add_kernel(x_ref, pe_ref, o_ref, *, batch, d_model):
    pe = pe_ref[...]
    for b in range(batch):
        sl = slice(b * d_model, (b + 1) * d_model)
        o_ref[:, sl] = (x_ref[:, sl] + pe).astype(o_ref.dtype)


def _round_up(n, m):
    return ((n + m - 1) // m) * m


def structural_aligned_encoder_forward(x, pe, *, seq_tile=None, use_kernel=None,
                                       small_input_bytes=256 * 1024):
    """x: [seq, batch, d_model]; pe: [max_len, 1, d_model].  Returns x + pe[:seq].

    Dropout is treated as identity (eval mode)."""
    S, B, D = x.shape
    max_len = pe.shape[0]
    if max_len < S:
        raise ValueError(
            f"sequence length {S} exceeds positional-encoding max_len {max_len}")
    if pe.shape[1] != 1 or pe.shape[2] != D:
        raise ValueError(f"pe shape {pe.shape} incompatible with d_model={D}")

    itemsize = x.dtype.itemsize
    total_bytes = S * B * D * itemsize
    if use_kernel is None:
        use_kernel = total_bytes >= small_input_bytes
    if not use_kernel:
        # Tiny tensors: kernel launch + pipeline setup would dominate.
        return x + pe[:S].astype(x.dtype)

    # Lane-dense flat views (both are free reshapes of contiguous arrays);
    # pe is sliced (tiny) and cast to x.dtype once so the kernel does no
    # per-element dtype conversion and x/pe rows stay aligned at the boundary.
    x2 = x.reshape(S, B * D)
    pe2 = pe[:S].reshape(S, D).astype(x.dtype)

    # ---- per-generation VMEM budgeting --------------------------------------
    try:
        vmem_cap = int(pltpu.get_tpu_info().vmem_capacity_bytes)
    except Exception:
        vmem_cap = 64 * 1024 * 1024                       # conservative (v7x per-TC)
    live_budget = min(24 * 1024 * 1024, vmem_cap // 3)    # live double-buffered blocks

    def lane_pad(n):
        return max(128, _round_up(n, 128))

    # Bytes of VMEM per sequence row: (x + out) blocks + pe block, each
    # double-buffered, with 128-lane padding accounted for.  Sublanes are kept
    # dense by choosing seq_tile as a multiple of 8 (or the full S).
    row_bytes = 2 * (2 * lane_pad(B * D) + lane_pad(D)) * itemsize

    if seq_tile is None:
        seq_tile = max(8, live_budget // row_bytes)
    seq_tile = int(seq_tile)
    if seq_tile >= S:
        if S >= 1024:
            # Emit >= 2 tiles so both v7x TensorCores get work (measured-neutral
            # on single-TC v5e/v6e).
            seq_tile = _round_up(pl.cdiv(S, 2), 8)
        else:
            seq_tile = S
    else:
        seq_tile = max(8, (seq_tile // 8) * 8)

    grid = (pl.cdiv(S, seq_tile),)

    live_bytes = seq_tile * row_bytes
    vmem_limit = max(32 * 1024 * 1024, live_bytes + 16 * 1024 * 1024)
    vmem_limit = int(min(vmem_limit, vmem_cap - 8 * 1024 * 1024))

    out2 = pl.pallas_call(
        functools.partial(_structural_pe_add_kernel, batch=B, d_model=D),
        out_shape=jax.ShapeDtypeStruct((S, B * D), x.dtype),
        grid_spec=pltpu.PrefetchScalarGridSpec(
            num_scalar_prefetch=0,
            grid=grid,
            in_specs=[
                pl.BlockSpec((seq_tile, B * D), lambda i: (i, 0)),
                pl.BlockSpec((seq_tile, D), lambda i: (i, 0)),
            ],
            out_specs=pl.BlockSpec((seq_tile, B * D), lambda i: (i, 0)),
        ),
        compiler_params=pltpu.CompilerParams(
            dimension_semantics=("parallel",),   # independent tiles -> megacore on v7x
            vmem_limit_bytes=vmem_limit,
        ),
    )(x2, pe2)

    # Free view back to [seq, batch, d_model].  Dropout(p) in eval mode is identity.
    return out2.reshape(S, B, D)


# ----------------------------------------------------------------------------
# Host-side (one-time) construction of the structural positional encoding,
# replicating StructuralAlignedEncoder.__init__ from coordinate arrays.
# ----------------------------------------------------------------------------
def _interleave_sin_cos(args, width):
    """Columns 0::2 = sin(args), 1::2 = cos(args); crop/zero-pad to `width`.

    (The PyTorch source interleaves with slice assignment into a zero buffer;
    crop/pad keeps the same intent for every d_model without the shape pitfalls
    of the original slice-assignment code.)"""
    s = jnp.sin(args)
    c = jnp.cos(args)
    inter = jnp.stack([s, c], axis=-1).reshape(args.shape[0], -1)   # [N, 2K]
    if inter.shape[1] >= width:
        return inter[:, :width]
    return jnp.pad(inter, ((0, 0), (0, width - inter.shape[1])))


def make_structural_pe(xs, ys, zs, max_len, d_model):
    """xs/ys/zs: [max_len] residue coordinates.  Returns pe: [max_len, 1, d_model]."""
    xstop = d_model // 4
    zstop = 3 * xstop

    position = jnp.arange(max_len, dtype=jnp.float32)[:, None]
    div_coord = jnp.exp(jnp.arange(0, xstop, 2, dtype=jnp.float32)
                        * (-math.log(10000.0) / d_model))
    div_pos = jnp.exp(jnp.arange(0, d_model - zstop, 2, dtype=jnp.float32)
                      * (-math.log(10000.0) / d_model))

    pex = _interleave_sin_cos(xs[:, None] * div_coord, xstop)
    pey = _interleave_sin_cos(ys[:, None] * div_coord, xstop)
    pez = _interleave_sin_cos(zs[:, None] * div_coord, xstop)
    pel = _interleave_sin_cos(position * div_pos, d_model - zstop + 1)

    pe = jnp.concatenate([pex, pey, pez, pel[:, :-1]], axis=1)      # [max_len, d_model]
    return pe[:, None, :]                                           # unsqueeze(0).transpose(0,1)


def reference_forward(x, pe):
    """Plain-JAX reference of the PyTorch forward (eval mode)."""
    return x + pe[:x.shape[0]]


if __name__ == "__main__":
    key = jax.random.PRNGKey(0)
    k_x, k_xs, k_ys, k_zs, k_x2, k_c2 = jax.random.split(key, 6)

    # --- Test 1: small shapes consistent with the module -------------------
    # d_model=32, max_len=25, seq=8, batch=2.  Force the Pallas path (the auto
    # heuristic would otherwise use the plain-JAX fast path for a 2 KiB add).
    d_model, max_len, seq, batch = 32, 25, 8, 2
    xs = jax.random.normal(k_xs, (max_len,), jnp.float32) * 10.0
    ys = jax.random.normal(k_ys, (max_len,), jnp.float32) * 10.0
    zs = jax.random.normal(k_zs, (max_len,), jnp.float32) * 10.0
    pe = make_structural_pe(xs, ys, zs, max_len, d_model)           # [25, 1, 32]
    x = jax.random.normal(k_x, (seq, batch, d_model), jnp.float32)  # [8, 2, 32]

    out = structural_aligned_encoder_forward(x, pe, use_kernel=True)
    jax.block_until_ready(out)
    ref = reference_forward(x, pe)
    assert out.shape == (seq, batch, d_model) and out.dtype == x.dtype
    assert jnp.allclose(out, ref, atol=1e-6), float(jnp.max(jnp.abs(out - ref)))

    # --- Test 2: larger, lane-aligned case with a multi-tile grid ----------
    # Exercises D % 128 == 0 (unmasked stores) and a partial final block.
    d2, ml2, s2, b2 = 128, 256, 192, 4
    coords2 = jax.random.normal(k_c2, (3, ml2), jnp.float32) * 10.0
    pe_big = make_structural_pe(coords2[0], coords2[1], coords2[2], ml2, d2)
    x_big = jax.random.normal(k_x2, (s2, b2, d2), jnp.float32)

    out_big = structural_aligned_encoder_forward(x_big, pe_big, seq_tile=80)
    jax.block_until_ready(out_big)
    ref_big = reference_forward(x_big, pe_big)
    assert out_big.shape == (s2, b2, d2)
    assert jnp.allclose(out_big, ref_big, atol=1e-6), \
        float(jnp.max(jnp.abs(out_big - ref_big)))

    print("KERNEL_OK")
</pallas_src>

<mosaic_0001>
module attributes {stable_mosaic.version = 11 : i64} {
  func.func @_structural_pe_add_kernel(%arg0: i32, %arg1: memref<8x64xf32, #tpu.memory_space<vmem>>, %arg2: memref<8x32xf32, #tpu.memory_space<vmem>>, %arg3: memref<8x64xf32, #tpu.memory_space<vmem>>) attributes {dimension_semantics = [#tpu.dimension_semantics<parallel>], iteration_bounds = array<i64: 1>, scalar_prefetch = 0 : i64, scratch_operands = 0 : i64, tpu.core_type = #tpu.core_type<tc>, window_params = [{transform_indices = @transform_0, window_bounds = array<i64: 8, 64>}, {transform_indices = @transform_1, window_bounds = array<i64: 8, 32>}, {transform_indices = @transform_2, window_bounds = array<i64: 8, 64>}]} {
    %c0 = arith.constant 0 : index
    %c0_0 = arith.constant 0 : index
    %0 = vector.load %arg2[%c0, %c0_0] : memref<8x32xf32, #tpu.memory_space<vmem>>, vector<8x32xf32>
    %c0_1 = arith.constant 0 : index
    %c0_2 = arith.constant 0 : index
    %1 = vector.load %arg1[%c0_1, %c0_2] : memref<8x64xf32, #tpu.memory_space<vmem>>, vector<8x32xf32>
    %2 = arith.addf %1, %0 : vector<8x32xf32>
    %c0_3 = arith.constant 0 : index
    %c0_4 = arith.constant 0 : index
    %3 = vector.load %arg3[%c0_3, %c0_4] : memref<8x64xf32, #tpu.memory_space<vmem>>, vector<8x32xf32>
    tpu.vector_store %arg3[%c0_3, %c0_4], %2 {strides = array<i32>} : memref<8x64xf32, #tpu.memory_space<vmem>>, vector<8x32xf32>,
    %c0_5 = arith.constant 0 : index
    %c32 = arith.constant 32 : index
    %4 = vector.load %arg1[%c0_5, %c32] : memref<8x64xf32, #tpu.memory_space<vmem>>, vector<8x32xf32>
    %5 = arith.addf %4, %0 : vector<8x32xf32>
    %c0_6 = arith.constant 0 : index
    %c32_7 = arith.constant 32 : index
    %6 = vector.load %arg3[%c0_6, %c32_7] : memref<8x64xf32, #tpu.memory_space<vmem>>, vector<8x32xf32>
    tpu.vector_store %arg3[%c0_6, %c32_7], %5 {strides = array<i32>} : memref<8x64xf32, #tpu.memory_space<vmem>>, vector<8x32xf32>,
    return
  }
  func.func @transform_0(%arg0: i32) -> (i32, i32) {
    %c0_i32 = arith.constant 0 : i32
    %c0_i32_0 = arith.constant 0 : i32
    return %arg0, %c0_i32 : i32, i32
  }
  func.func @transform_1(%arg0: i32) -> (i32, i32) {
    %c0_i32 = arith.constant 0 : i32
    %c0_i32_0 = arith.constant 0 : i32
    return %arg0, %c0_i32 : i32, i32
  }
  func.func @transform_2(%arg0: i32) -> (i32, i32) {
    %c0_i32 = arith.constant 0 : i32
    %c0_i32_0 = arith.constant 0 : i32
    return %arg0, %c0_i32 : i32, i32
  }
}

</mosaic_0001>

<llo_original>
// kernel: tpu_custom_call.1
$region0: #{tpu_custom_call.1}
  #allocation0 [shape = 'u32[]', space=smem, size = 0x4, offset = 0x4, fixed_abs, tag = 'smem constant byte address 0x4 - core index']
  #allocation1 [shape = 'u32[144,128]{1,0:T(1,128)}', space=vmem, size = 0x12000, scoped, tag = 'internal scratch']
  %s0 = inlined_call_operand.hbm [shape: f32[8,64], index: 0, kind: input, shape index: {}]
  %s1 = inlined_call_operand.hbm [shape: f32[8,32], index: 1, kind: input, shape index: {}]
  %s2 = inlined_call_operand.hbm [shape: f32[8,64], index: 2, kind: output, shape index: {}]
  %s3 = sld [smem:[#allocation0]]
  $region26: #{tpu_custom_call.1} parent=0
    _
  %s5 = ssub.s32 1, %s3
  %s6 = scalar_select 0, %s5, %s3
  $region1: #{tpu_custom_call.1} parent=0
    #allocation2 [shape = 'u8[4096]{0}', space=vmem, size = 0x1000, scoped, tag = 'input window, operand 0, single buffered']
    #allocation3 [shape = 's32[1]{0}', space=sflag, size = 0x4, scoped, tag = 'scoped memory for tpu_custom_call.1']
    #allocation4 [shape = 's32[1]{0}', space=sflag, size = 0x4, scoped, tag = 'scoped memory for tpu_custom_call.1']
    #allocation5 [shape = 'u8[4096]{0}', space=vmem, size = 0x1000, scoped, tag = 'input window, operand 1, single buffered']
    #allocation6 [shape = 's32[1]{0}', space=sflag, size = 0x4, scoped, tag = 'scoped memory for tpu_custom_call.1']
    #allocation7 [shape = 'u8[4096]{0}', space=vmem, size = 0x1000, scoped, tag = 'output window, operand 0, single buffered']
    %7 = vsyncpa [#allocation3], 0
    %8 = vsyncpa [#allocation6], 0
    %9 = vsyncpa [#allocation4], 0
    // Predicated region
    $region2: #{tpu_custom_call.1} parent=1 // pred_check
      _
    $region3: #{tpu_custom_call.1} parent=1 // pred_check_branch
      %11 = sbr.rel (0) target = $region5
    $region4: #{tpu_custom_call.1} parent=1 // pred_region
      %s13 = ssub.s32 128, 128
      %14 = vsyncadd [#allocation3], %s13
      %s16 = sshll.u32 [#allocation2], 4
      %s17 = int_to_ptr.vmem [resolvable:$true] %s16
      %19 = dma.hbm_to_vmem [thread:$0]  %s0, 128, %s17, [#allocation3]
    $region5: #{tpu_custom_call.1} parent=1 // pred_fallthru
      _
    // Predicated region
    $region6: #{tpu_custom_call.1} parent=1 // pred_check
      _
    $region7: #{tpu_custom_call.1} parent=1 // pred_check_branch
      %21 = sbr.rel (0) target = $region9
    $region8: #{tpu_custom_call.1} parent=1 // pred_region
      %s23 = ssub.s32 128, 128
      %24 = vsyncadd [#allocation6], %s23
      %s26 = sshll.u32 [#allocation5], 4
      %s27 = int_to_ptr.vmem [resolvable:$true] %s26
      %29 = dma.hbm_to_vmem [thread:$0]  %s1, 128, %s27, [#allocation6]
    $region9: #{tpu_custom_call.1} parent=1 // pred_fallthru
      _
    // Predicated region
    $region10: #{tpu_custom_call.1} parent=1 // pred_check
      _
    $region11: #{tpu_custom_call.1} parent=1 // pred_check_branch
      %31 = sbr.rel (0) target = $region13
    $region12: #{tpu_custom_call.1} parent=1 // pred_region
      %32 = dma.done [#allocation3], 128
    $region13: #{tpu_custom_call.1} parent=1 // pred_fallthru
      _
    // Predicated region
    $region14: #{tpu_custom_call.1} parent=1 // pred_check
      _
    $region15: #{tpu_custom_call.1} parent=1 // pred_check_branch
      %34 = sbr.rel (0) target = $region17
    $region16: #{tpu_custom_call.1} parent=1 // pred_region
      %35 = dma.done [#allocation6], 128
    $region17: #{tpu_custom_call.1} parent=1 // pred_fallthru
      _
    %v36 = vld [vmem:[#allocation5] sm:$0xff]
    %v37 = vld [vmem:[#allocation2] sm:$0xff]
    %v38 = vadd.f32 %v37, %v36
    %vm39 = vcmask 261120
    %40 = vst.msk [vmem:[#allocation7] sm:$0xff] %vm39, %v38
    %v41 = vld [vmem:[#allocation2] sm:$0xff]
    %43 = vrot.lane.b32.xlu0 %v36, 32
    %v44 = vpop.permute.xlu0 %43
    %v46 = vadd.f32 %v41, %v44
    %vm47 = vcmask 523520
    %48 = vst.msk [vmem:[#allocation7] sm:$0xff] %vm47, %v46
    // Predicated region
    $region18: #{tpu_custom_call.1} parent=1 // pred_check
      _
    $region19: #{tpu_custom_call.1} parent=1 // pred_check_branch
      %50 = sbr.rel (0) target = $region21
    $region20: #{tpu_custom_call.1} parent=1 // pred_region
      %s52 = ssub.s32 128, 128
      %53 = vsyncadd [#allocation4], %s52
      %s55 = sshll.u32 [#allocation7], 4
      %s56 = int_to_ptr.vmem [resolvable:$true] %s55
      %58 = dma.vmem_to_hbm [thread:$0]  %s56, 128, %s2, [#allocation4]
    $region21: #{tpu_custom_call.1} parent=1 // pred_fallthru
      _
    // Predicated region
    $region22: #{tpu_custom_call.1} parent=1 // pred_check
      _
    $region23: #{tpu_custom_call.1} parent=1 // pred_check_branch
      %60 = sbr.rel (0) target = $region25
    $region24: #{tpu_custom_call.1} parent=1 // pred_region
      %61 = dma.done [#allocation4], 128
    $region25: #{tpu_custom_call.1} parent=1 // pred_fallthru
      _
    %62 = vsyncpa [#allocation3], 1
    %63 = vsyncpa [#allocation6], 1
    %64 = vsyncpa [#allocation4], 1

</llo_original>
